<compile_context>
chip_gen: v7x
topology: tpu7x:2x2x1
jax: 0.10.0
libtpu: 0.0.40
codegen_flags: <defaults>
</compile_context>

<pallas_src>
import functools

import jax
import jax.numpy as jnp
from jax import lax
from jax.experimental import pallas as pl
from jax.experimental.pallas import tpu as pltpu


def _round_up(x, m):
    return ((x + m - 1) // m) * m


def conv_relu_stats_kernel(x_ref, w_ref, b_ref, y_ref, s1_ref, s2_ref,
                           *scratch, ksize, dilation, stride, c_in, b_tile,
                           t_tile, t_out, nt, stack_taps):
    """One (batch tile, time tile): conv + bias + ReLU + BN partial sums.

    x_ref:  (B_TILE, C_in, T_in_work)  bf16, full time, resident per batch tile
    w_ref:  (C_out, K*C_in)            bf16, tap-major rows (row = k*C_in + i)
    b_ref:  (C_out, 1)                 f32 conv bias
    y_ref:  (B_TILE, C_out, T_TILE)    bf16 pre-BN activation tile
    s1_ref: (1, C_out, 1)              f32 sum_t (y - pivot)       (accumulated)
    s2_ref: (1, C_out, 1)              f32 sum_t (y - pivot)^2     (accumulated)
    scratch:[(K*C_in, B_TILE*T_TILE)]  f32 tap/batch packing buffer (small C_in)
    """
    t = pl.program_id(1)
    lanes = b_tile * t_tile
    ts_in = t_tile * stride                      # input columns per time tile
    if nt == 1:
        base = 0                                 # fully static slice starts
    else:
        base = pl.multiple_of(t * ts_in, 128)    # t_tile is a multiple of 128

    def tap(bl, k):
        start = base + k * dilation
        if stride == 1:
            return x_ref[bl, :, pl.ds(start, t_tile)]
        return x_ref[bl, :, pl.ds(start, t_tile, stride=stride)]

    if stack_taps:
        # Small C_in: one fused contraction over the (tap, channel) axis with
        # B_TILE batch elements packed along the lane axis.
        xcat_ref, = scratch
        for bl in range(b_tile):
            for k in range(ksize):
                xcat_ref[k * c_in:(k + 1) * c_in,
                         bl * t_tile:(bl + 1) * t_tile] = (
                    tap(bl, k).astype(jnp.float32))
        y = jnp.dot(w_ref[...].astype(jnp.float32), xcat_ref[...],
                    preferred_element_type=jnp.float32)
    else:
        # Large C_in (b_tile == 1): K shifted bf16 dots accumulated in f32 --
        # no stacking copy through the vector-store slot, no big scratch.
        y = jnp.dot(w_ref[:, :c_in], tap(0, 0),
                    preferred_element_type=jnp.float32)
        for k in range(1, ksize):
            y = y + jnp.dot(w_ref[:, k * c_in:(k + 1) * c_in], tap(0, k),
                            preferred_element_type=jnp.float32)

    y = jnp.maximum(y + b_ref[...], 0.0)         # bias + ReLU, f32, (C_out, lanes)

    # Lane-dense bf16 store of the pre-BN activation (per packed batch element).
    for bl in range(b_tile):
        y_ref[bl] = y[:, bl * t_tile:(bl + 1) * t_tile].astype(y_ref.dtype)

    # BatchNorm partial sums, accumulated in the VMEM-resident output block
    # across time tiles.  The per-channel pivot (= relu(bias)) keeps the
    # wrapper's E[z^2]-E[z]^2 from cancelling catastrophically.
    lane = lax.broadcasted_iota(jnp.int32, (1, lanes), 1)
    valid = ((t * t_tile + lane % t_tile) < t_out).astype(jnp.float32)
    pivot = jnp.maximum(b_ref[...], 0.0)
    yc = (y - pivot) * valid

    @pl.when(t == 0)
    def _():
        s1_ref[...] = jnp.zeros_like(s1_ref)
        s2_ref[...] = jnp.zeros_like(s2_ref)

    s1_ref[0] += jnp.sum(yc, axis=1, keepdims=True)
    s2_ref[0] += jnp.sum(yc * yc, axis=1, keepdims=True)


def bn_apply_kernel(y_ref, scale_ref, shift_ref, o_ref):
    """out = y * (gamma*rstd) + (beta - mean*gamma*rstd), lane-dense store."""
    o_ref[...] = (y_ref[...].astype(jnp.float32) * scale_ref[...]
                  + shift_ref[...])


def tdnn_layer(x, weight, bias, gamma, beta, *,
               stride=1, padding=0, dilation=1, eps=1e-3):
    """x: (N, C_in, T) -> (N, C_out, T_out); Conv1d + ReLU + BatchNorm1d(train)."""
    N, C_in, T = x.shape
    C_out, _, K = weight.shape
    T_out = (T + 2 * padding - dilation * (K - 1) - 1) // stride + 1
    assert T_out > 0

    # ---- time tiling -------------------------------------------------------
    t_tile_max = 512                      # 512 lanes/tile keeps 2x(x)+2x(y)+
                                          # weights+scratch well under v7x 64MiB
    T_work = _round_up(max(T_out, 128), 128)
    if T_work > t_tile_max:
        T_work = _round_up(T_work, t_tile_max)
        t_tile = t_tile_max
    else:
        t_tile = T_work
    nt = T_work // t_tile
    T_in_work = (T_work - 1) * stride + dilation * (K - 1) + 1

    # ---- batch tiling (pack small-channel configs into the lane axis) -------
    if C_in >= 128:
        b_tile, stack_taps = 1, False
    else:
        stack_taps = True
        b_tile = 1
        for cand in range(min(N, 8), 0, -1):
            if N % cand == 0 and cand * C_in * T_in_work * 2 <= 8 * 1024 * 1024:
                b_tile = cand
                break
    nb = N // b_tile

    f32, bf16 = jnp.float32, jnp.bfloat16
    # bf16 operands for the HBM streams / MXU; bias, stats and BN math in f32.
    x_bf = x.astype(bf16)
    x_p = jnp.pad(x_bf, ((0, 0), (0, 0),
                         (padding, max(0, T_in_work - T - padding))))
    x_p = x_p[:, :, :T_in_work]
    # (C_out, C_in, K) -> (C_out, K*C_in); row index = k*C_in + i (tap-major).
    w2d = jnp.transpose(weight, (0, 2, 1)).reshape(C_out, K * C_in).astype(bf16)
    b2d = bias.astype(f32).reshape(C_out, 1)

    # VMEM budget: stay <= ~48 MiB so double-buffering survives v7x's 64 MiB;
    # use more of v5e/v6e's 128 MiB when the hardware query is available.
    vmem_limit = 48 * 1024 * 1024
    try:
        cap = int(pltpu.get_tpu_info().vmem_capacity_bytes)
        if cap >= 32 * 1024 * 1024:
            vmem_limit = min(cap * 3 // 4, 100 * 1024 * 1024)
    except Exception:
        pass

    scratch_shapes = []
    if stack_taps:
        scratch_shapes = [pltpu.VMEM((K * C_in, b_tile * t_tile), f32)]

    kernel1 = functools.partial(
        conv_relu_stats_kernel, ksize=K, dilation=dilation, stride=stride,
        c_in=C_in, b_tile=b_tile, t_tile=t_tile, t_out=T_out, nt=nt,
        stack_taps=stack_taps)

    # TODO(synk): x is held full-length per batch tile (DMA'd once per batch
    # tile); for very long sequences add a halo-tiled manual DMA of x as well.
    # TODO(synk): once C_out*K*C_in reaches several MiB, single-buffer the
    # constant-index weight/bias blocks (pipeline_mode) to save v7x VMEM.
    y_pad, s1, s2 = pl.pallas_call(
        kernel1,
        grid=(nb, nt),
        out_shape=(
            jax.ShapeDtypeStruct((N, C_out, T_work), bf16),
            jax.ShapeDtypeStruct((nb, C_out, 1), f32),
            jax.ShapeDtypeStruct((nb, C_out, 1), f32),
        ),
        in_specs=[
            pl.BlockSpec((b_tile, C_in, T_in_work), lambda b, t: (b, 0, 0)),
            pl.BlockSpec((C_out, K * C_in), lambda b, t: (0, 0)),
            pl.BlockSpec((C_out, 1), lambda b, t: (0, 0)),
        ],
        out_specs=(
            pl.BlockSpec((b_tile, C_out, t_tile), lambda b, t: (b, 0, t)),
            pl.BlockSpec((1, C_out, 1), lambda b, t: (b, 0, 0)),
            pl.BlockSpec((1, C_out, 1), lambda b, t: (b, 0, 0)),
        ),
        scratch_shapes=scratch_shapes,
        compiler_params=pltpu.CompilerParams(
            dimension_semantics=("parallel", "arbitrary"),
            vmem_limit_bytes=vmem_limit),
    )(x_p, w2d, b2d)

    # Finalize training-mode BatchNorm statistics (O(C_out) XLA glue) and fold
    # them with gamma/beta so pass 2 is a single fused multiply-add.
    count = jnp.asarray(N * T_out, f32)
    pivot = jnp.maximum(bias.astype(f32), 0.0)                  # (C_out,)
    d = jnp.sum(s1[:, :, 0], axis=0) / count
    mean = pivot + d
    var = jnp.maximum(jnp.sum(s2[:, :, 0], axis=0) / count - d * d, 0.0)
    rstd = lax.rsqrt(var + eps)
    g = gamma.astype(f32)
    scale = (g * rstd).reshape(C_out, 1)
    shift = (beta.astype(f32) - mean * g * rstd).reshape(C_out, 1)

    out_pad = pl.pallas_call(
        bn_apply_kernel,
        grid=(nb, nt),
        out_shape=jax.ShapeDtypeStruct((N, C_out, T_work), f32),
        in_specs=[
            pl.BlockSpec((b_tile, C_out, t_tile), lambda b, t: (b, 0, t)),
            pl.BlockSpec((C_out, 1), lambda b, t: (0, 0)),
            pl.BlockSpec((C_out, 1), lambda b, t: (0, 0)),
        ],
        out_specs=pl.BlockSpec((b_tile, C_out, t_tile), lambda b, t: (b, 0, t)),
        compiler_params=pltpu.CompilerParams(
            dimension_semantics=("parallel", "parallel"),
            vmem_limit_bytes=vmem_limit),
    )(y_pad, scale, shift)

    # Kernel stores stay lane-dense; the (possibly masked) T_out slice happens
    # once here in XLA.  (Final dtype is f32 to match the module, so the bf16
    # intermediate cannot simply be aliased as the output buffer.)
    out = out_pad[:, :, :T_out]

    # TODO(synk): dropout>0 masking and BatchNorm running_mean/var buffer
    # updates are stateful and not part of this forward output; not produced.
    return out


def reference(x, weight, bias, gamma, beta, *, stride, padding, dilation, eps):
    y = lax.conv_general_dilated(
        x, weight, window_strides=(stride,), padding=[(padding, padding)],
        rhs_dilation=(dilation,), dimension_numbers=("NCH", "OIH", "NCH"))
    y = y + bias[None, :, None]
    y = jnp.maximum(y, 0.0)
    mean = jnp.mean(y, axis=(0, 2), keepdims=True)
    var = jnp.mean(jnp.square(y - mean), axis=(0, 2), keepdims=True)
    return ((y - mean) * lax.rsqrt(var + eps) * gamma[None, :, None]
            + beta[None, :, None])


if __name__ == "__main__":
    # TDNNLayer(n_in=4, n_out=8, kernel_size=3, stride=1, padding=0, dilation=1)
    N, C_in, T = 2, 4, 16
    C_out, K = 8, 3
    stride, padding, dilation, eps = 1, 0, 1, 1e-3   # BatchNorm1d eps = 0.001

    key = jax.random.PRNGKey(0)
    kx, kw, kb = jax.random.split(key, 3)
    x = jax.random.normal(kx, (N, C_in, T), dtype=jnp.float32)
    weight = 0.1 * jax.random.normal(kw, (C_out, C_in, K), dtype=jnp.float32)
    bias = 0.1 * jax.random.normal(kb, (C_out,), dtype=jnp.float32)
    gamma = jnp.ones((C_out,), jnp.float32)          # BatchNorm1d affine defaults
    beta = jnp.zeros((C_out,), jnp.float32)

    out = tdnn_layer(x, weight, bias, gamma, beta,
                     stride=stride, padding=padding, dilation=dilation, eps=eps)
    out = jax.block_until_ready(out)

    # Reference on the same bf16-quantized operands (the kernel streams x/w as
    # bf16 with f32 accumulation); tolerance covers the bf16 y intermediate.
    xq = x.astype(jnp.bfloat16).astype(jnp.float32)
    wq = weight.astype(jnp.bfloat16).astype(jnp.float32)
    ref = reference(xq, wq, bias, gamma, beta,
                    stride=stride, padding=padding, dilation=dilation, eps=eps)
    assert out.shape == ref.shape, (out.shape, ref.shape)
    err = float(jnp.max(jnp.abs(out - ref)))
    assert err < 5e-2, err

    print("KERNEL_OK")
</pallas_src>

<mosaic_0001>
module attributes {stable_mosaic.version = 11 : i64} {
  func.func @conv_relu_stats_kernel(%arg0: i32, %arg1: i32, %arg2: memref<2x4x130xbf16, #tpu.memory_space<vmem>>, %arg3: memref<8x12xbf16, #tpu.memory_space<vmem>>, %arg4: memref<8x1xf32, #tpu.memory_space<vmem>>, %arg5: memref<2x8x128xbf16, #tpu.memory_space<vmem>>, %arg6: memref<1x8x1xf32, #tpu.memory_space<vmem>>, %arg7: memref<1x8x1xf32, #tpu.memory_space<vmem>>, %arg8: memref<12x256xf32, #tpu.memory_space<vmem>>) attributes {dimension_semantics = [#tpu.dimension_semantics<parallel>, #tpu.dimension_semantics<arbitrary>], iteration_bounds = array<i64: 1, 1>, scalar_prefetch = 0 : i64, scratch_operands = 1 : i64, tpu.core_type = #tpu.core_type<tc>, window_params = [{transform_indices = @transform_0, window_bounds = array<i64: 2, 4, 130>}, {pipeline_mode = #tpu.pipeline_mode<synchronous>, transform_indices = @transform_1, window_bounds = array<i64: 8, 12>}, {pipeline_mode = #tpu.pipeline_mode<synchronous>, transform_indices = @transform_2, window_bounds = array<i64: 8, 1>}, {transform_indices = @transform_3, window_bounds = array<i64: 2, 8, 128>}, {transform_indices = @transform_4, window_bounds = array<i64: 1, 8, 1>}, {transform_indices = @transform_5, window_bounds = array<i64: 1, 8, 1>}]} {
    %c0 = arith.constant 0 : index
    %c0_0 = arith.constant 0 : index
    %c0_1 = arith.constant 0 : index
    %0 = vector.load %arg2[%c0, %c0_0, %c0_1] : memref<2x4x130xbf16, #tpu.memory_space<vmem>>, vector<1x4x128xbf16>
    %1 = vector.shape_cast %0 : vector<1x4x128xbf16> to vector<4x128xbf16>
    %2 = arith.extf %1 : vector<4x128xbf16> to vector<4x128xf32>
    %c0_2 = arith.constant 0 : index
    %c0_3 = arith.constant 0 : index
    %3 = vector.load %arg8[%c0_2, %c0_3] : memref<12x256xf32, #tpu.memory_space<vmem>>, vector<4x128xf32>
    tpu.vector_store %arg8[%c0_2, %c0_3], %2 {strides = array<i32>} : memref<12x256xf32, #tpu.memory_space<vmem>>, vector<4x128xf32>,
    %c0_4 = arith.constant 0 : index
    %c0_5 = arith.constant 0 : index
    %c1 = arith.constant 1 : index
    %4 = vector.load %arg2[%c0_4, %c0_5, %c1] : memref<2x4x130xbf16, #tpu.memory_space<vmem>>, vector<1x4x128xbf16>
    %5 = vector.shape_cast %4 : vector<1x4x128xbf16> to vector<4x128xbf16>
    %6 = arith.extf %5 : vector<4x128xbf16> to vector<4x128xf32>
    %c4 = arith.constant 4 : index
    %c0_6 = arith.constant 0 : index
    %7 = vector.load %arg8[%c4, %c0_6] : memref<12x256xf32, #tpu.memory_space<vmem>>, vector<4x128xf32>
    tpu.vector_store %arg8[%c4, %c0_6], %6 {strides = array<i32>} : memref<12x256xf32, #tpu.memory_space<vmem>>, vector<4x128xf32>,
    %c0_7 = arith.constant 0 : index
    %c0_8 = arith.constant 0 : index
    %c2 = arith.constant 2 : index
    %8 = vector.load %arg2[%c0_7, %c0_8, %c2] : memref<2x4x130xbf16, #tpu.memory_space<vmem>>, vector<1x4x128xbf16>
    %9 = vector.shape_cast %8 : vector<1x4x128xbf16> to vector<4x128xbf16>
    %10 = arith.extf %9 : vector<4x128xbf16> to vector<4x128xf32>
    %c8 = arith.constant 8 : index
    %c0_9 = arith.constant 0 : index
    %11 = vector.load %arg8[%c8, %c0_9] : memref<12x256xf32, #tpu.memory_space<vmem>>, vector<4x128xf32>
    tpu.vector_store %arg8[%c8, %c0_9], %10 {strides = array<i32>} : memref<12x256xf32, #tpu.memory_space<vmem>>, vector<4x128xf32>,
    %c1_10 = arith.constant 1 : index
    %c0_11 = arith.constant 0 : index
    %c0_12 = arith.constant 0 : index
    %12 = vector.load %arg2[%c1_10, %c0_11, %c0_12] : memref<2x4x130xbf16, #tpu.memory_space<vmem>>, vector<1x4x128xbf16>
    %13 = vector.shape_cast %12 : vector<1x4x128xbf16> to vector<4x128xbf16>
    %14 = arith.extf %13 : vector<4x128xbf16> to vector<4x128xf32>
    %c0_13 = arith.constant 0 : index
    %c128 = arith.constant 128 : index
    %15 = vector.load %arg8[%c0_13, %c128] : memref<12x256xf32, #tpu.memory_space<vmem>>, vector<4x128xf32>
    tpu.vector_store %arg8[%c0_13, %c128], %14 {strides = array<i32>} : memref<12x256xf32, #tpu.memory_space<vmem>>, vector<4x128xf32>,
    %c1_14 = arith.constant 1 : index
    %c0_15 = arith.constant 0 : index
    %c1_16 = arith.constant 1 : index
    %16 = vector.load %arg2[%c1_14, %c0_15, %c1_16] : memref<2x4x130xbf16, #tpu.memory_space<vmem>>, vector<1x4x128xbf16>
    %17 = vector.shape_cast %16 : vector<1x4x128xbf16> to vector<4x128xbf16>
    %18 = arith.extf %17 : vector<4x128xbf16> to vector<4x128xf32>
    %c4_17 = arith.constant 4 : index
    %c128_18 = arith.constant 128 : index
    %19 = vector.load %arg8[%c4_17, %c128_18] : memref<12x256xf32, #tpu.memory_space<vmem>>, vector<4x128xf32>
    tpu.vector_store %arg8[%c4_17, %c128_18], %18 {strides = array<i32>} : memref<12x256xf32, #tpu.memory_space<vmem>>, vector<4x128xf32>,
    %c1_19 = arith.constant 1 : index
    %c0_20 = arith.constant 0 : index
    %c2_21 = arith.constant 2 : index
    %20 = vector.load %arg2[%c1_19, %c0_20, %c2_21] : memref<2x4x130xbf16, #tpu.memory_space<vmem>>, vector<1x4x128xbf16>
    %21 = vector.shape_cast %20 : vector<1x4x128xbf16> to vector<4x128xbf16>
    %22 = arith.extf %21 : vector<4x128xbf16> to vector<4x128xf32>
    %c8_22 = arith.constant 8 : index
    %c128_23 = arith.constant 128 : index
    %23 = vector.load %arg8[%c8_22, %c128_23] : memref<12x256xf32, #tpu.memory_space<vmem>>, vector<4x128xf32>
    tpu.vector_store %arg8[%c8_22, %c128_23], %22 {strides = array<i32>} : memref<12x256xf32, #tpu.memory_space<vmem>>, vector<4x128xf32>,
    %c0_24 = arith.constant 0 : index
    %c0_25 = arith.constant 0 : index
    %24 = vector.load %arg3[%c0_24, %c0_25] : memref<8x12xbf16, #tpu.memory_space<vmem>>, vector<8x12xbf16>
    %25 = arith.extf %24 : vector<8x12xbf16> to vector<8x12xf32>
    %c0_26 = arith.constant 0 : index
    %c0_27 = arith.constant 0 : index
    %26 = vector.load %arg8[%c0_26, %c0_27] : memref<12x256xf32, #tpu.memory_space<vmem>>, vector<12x256xf32>
    %cst = arith.constant dense<0.000000e+00> : vector<8x256xf32>
    %27 = tpu.matmul %25, %26, %cst {dimension_numbers = #tpu.dot_dimension_numbers<[1], [0], [0], [1], [0, 0, 1, 1], [], []>} : vector<8x12xf32>, vector<12x256xf32>, vector<8x256xf32> -> vector<8x256xf32>
    %c0_28 = arith.constant 0 : index
    %c0_29 = arith.constant 0 : index
    %28 = vector.load %arg4[%c0_28, %c0_29] : memref<8x1xf32, #tpu.memory_space<vmem>>, vector<8x1xf32>
    %29 = vector.broadcast %28 : vector<8x1xf32> to vector<8x256xf32>
    %30 = arith.addf %27, %29 : vector<8x256xf32>
    %cst_30 = arith.constant 0.000000e+00 : f32
    %31 = vector.broadcast %cst_30 : f32 to vector<8x256xf32>
    %32 = arith.maximumf %30, %31 : vector<8x256xf32>
    %33 = vector.extract_strided_slice %32 {offsets = [0, 0], sizes = [8, 128], strides = [1, 1]} : vector<8x256xf32> to vector<8x128xf32>
    %34 = arith.truncf %33 : vector<8x128xf32> to vector<8x128xbf16>
    %c0_31 = arith.constant 0 : index
    %c0_32 = arith.constant 0 : index
    %c0_33 = arith.constant 0 : index
    %35 = vector.load %arg5[%c0_31, %c0_32, %c0_33] : memref<2x8x128xbf16, #tpu.memory_space<vmem>>, vector<1x8x128xbf16>
    %36 = vector.shape_cast %35 : vector<1x8x128xbf16> to vector<8x128xbf16>
    %37 = vector.shape_cast %34 : vector<8x128xbf16> to vector<1x8x128xbf16>
    tpu.vector_store %arg5[%c0_31, %c0_32, %c0_33], %37 {strides = array<i32>} : memref<2x8x128xbf16, #tpu.memory_space<vmem>>, vector<1x8x128xbf16>,
    %38 = vector.extract_strided_slice %32 {offsets = [0, 128], sizes = [8, 128], strides = [1, 1]} : vector<8x256xf32> to vector<8x128xf32>
    %39 = arith.truncf %38 : vector<8x128xf32> to vector<8x128xbf16>
    %c1_34 = arith.constant 1 : index
    %c0_35 = arith.constant 0 : index
    %c0_36 = arith.constant 0 : index
    %40 = vector.load %arg5[%c1_34, %c0_35, %c0_36] : memref<2x8x128xbf16, #tpu.memory_space<vmem>>, vector<1x8x128xbf16>
    %41 = vector.shape_cast %40 : vector<1x8x128xbf16> to vector<8x128xbf16>
    %42 = vector.shape_cast %39 : vector<8x128xbf16> to vector<1x8x128xbf16>
    tpu.vector_store %arg5[%c1_34, %c0_35, %c0_36], %42 {strides = array<i32>} : memref<2x8x128xbf16, #tpu.memory_space<vmem>>, vector<1x8x128xbf16>,
    %43 = tpu.iota {dimensions = array<i32: 1>} : vector<1x256xi32>
    %c128_i32 = arith.constant 128 : i32
    %44 = arith.muli %arg1, %c128_i32 : i32
    %c128_i32_37 = arith.constant 128 : i32
    %c0_i32 = arith.constant 0 : i32
    %45 = arith.cmpi eq, %c128_i32_37, %c0_i32 : i32
    %c1_i32 = arith.constant 1 : i32
    %46 = arith.select %45, %c1_i32, %c128_i32_37 : i32
    %47 = vector.broadcast %46 : i32 to vector<1x256xi32>
    %48 = arith.remsi %43, %47 : vector<1x256xi32>
    %c0_i32_38 = arith.constant 0 : i32
    %49 = vector.broadcast %c0_i32_38 : i32 to vector<1x256xi32>
    %50 = arith.cmpi ne, %48, %49 : vector<1x256xi32>
    %c0_i32_39 = arith.constant 0 : i32
    %51 = vector.broadcast %c0_i32_39 : i32 to vector<1x256xi32>
    %52 = arith.cmpi slt, %48, %51 : vector<1x256xi32>
    %c0_i32_40 = arith.constant 0 : i32
    %53 = arith.cmpi slt, %46, %c0_i32_40 : i32
    %54 = vector.broadcast %53 : i1 to vector<1x256xi1>
    %55 = vector.broadcast %54 : vector<1x256xi1> to vector<1x256xi1>
    %56 = arith.xori %52, %55 : vector<1x256xi1>
    %57 = arith.andi %56, %50 : vector<1x256xi1>
    %58 = vector.broadcast %46 : i32 to vector<1x256xi32>
    %59 = arith.addi %48, %58 : vector<1x256xi32>
    %60 = arith.select %57, %59, %48 : vector<1x256xi1>, vector<1x256xi32>
    %61 = vector.broadcast %44 : i32 to vector<1x256xi32>
    %62 = arith.addi %61, %60 : vector<1x256xi32>
    %c14_i32 = arith.constant 14 : i32
    %63 = vector.broadcast %c14_i32 : i32 to vector<1x256xi32>
    %64 = arith.cmpi slt, %62, %63 : vector<1x256xi32>
    %65 = arith.extui %64 : vector<1x256xi1> to vector<1x256xi32>
    %66 = arith.sitofp %65 : vector<1x256xi32> to vector<1x256xf32>
    %c0_41 = arith.constant 0 : index
    %c0_42 = arith.constant 0 : index
    %67 = vector.load %arg4[%c0_41, %c0_42] : memref<8x1xf32, #tpu.memory_space<vmem>>, vector<8x1xf32>
    %cst_43 = arith.constant 0.000000e+00 : f32
    %68 = vector.broadcast %cst_43 : f32 to vector<8x1xf32>
    %69 = arith.maximumf %67, %68 : vector<8x1xf32>
    %70 = vector.broadcast %69 : vector<8x1xf32> to vector<8x256xf32>
    %71 = arith.subf %32, %70 : vector<8x256xf32>
    %72 = vector.broadcast %66 : vector<1x256xf32> to vector<8x256xf32>
    %73 = arith.mulf %71, %72 : vector<8x256xf32>
    %c0_i32_44 = arith.constant 0 : i32
    %74 = arith.cmpi eq, %arg1, %c0_i32_44 : i32
    %75 = arith.extui %74 : i1 to i32
    %c0_i32_45 = arith.constant 0 : i32
    %76 = arith.cmpi ne, %75, %c0_i32_45 : i32
    scf.if %76 {
      %cst_60 = arith.constant 0.000000e+00 : f32
      %94 = vector.broadcast %cst_60 : f32 to vector<1x8x1xf32>
      %c0_61 = arith.constant 0 : index
      %c0_62 = arith.constant 0 : index
      %c0_63 = arith.constant 0 : index
      %95 = vector.load %arg6[%c0_61, %c0_62, %c0_63] : memref<1x8x1xf32, #tpu.memory_space<vmem>>, vector<1x8x1xf32>
      tpu.vector_store %arg6[%c0_61, %c0_62, %c0_63], %94 {strides = array<i32>} : memref<1x8x1xf32, #tpu.memory_space<vmem>>, vector<1x8x1xf32>,
      %cst_64 = arith.constant 0.000000e+00 : f32
      %96 = vector.broadcast %cst_64 : f32 to vector<1x8x1xf32>
      %c0_65 = arith.constant 0 : index
      %c0_66 = arith.constant 0 : index
      %c0_67 = arith.constant 0 : index
      %97 = vector.load %arg7[%c0_65, %c0_66, %c0_67] : memref<1x8x1xf32, #tpu.memory_space<vmem>>, vector<1x8x1xf32>
      tpu.vector_store %arg7[%c0_65, %c0_66, %c0_67], %96 {strides = array<i32>} : memref<1x8x1xf32, #tpu.memory_space<vmem>>, vector<1x8x1xf32>,
    } else {
    }
    %c0_46 = arith.constant 0 : index
    %c0_47 = arith.constant 0 : index
    %c0_48 = arith.constant 0 : index
    %77 = vector.load %arg6[%c0_46, %c0_47, %c0_48] : memref<1x8x1xf32, #tpu.memory_space<vmem>>, vector<1x8x1xf32>
    %78 = vector.shape_cast %77 : vector<1x8x1xf32> to vector<8x1xf32>
    %cst_49 = arith.constant dense<0.000000e+00> : vector<8xf32>
    %79 = vector.multi_reduction <add>, %73, %cst_49 [1] : vector<8x256xf32> to vector<8xf32>
    %80 = vector.shape_cast %79 : vector<8xf32> to vector<8x1xf32>
    %81 = arith.addf %78, %80 : vector<8x1xf32>
    %c0_50 = arith.constant 0 : index
    %c0_51 = arith.constant 0 : index
    %c0_52 = arith.constant 0 : index
    %82 = vector.load %arg6[%c0_50, %c0_51, %c0_52] : memref<1x8x1xf32, #tpu.memory_space<vmem>>, vector<1x8x1xf32>
    %83 = vector.shape_cast %82 : vector<1x8x1xf32> to vector<8x1xf32>
    %84 = vector.shape_cast %81 : vector<8x1xf32> to vector<1x8x1xf32>
    tpu.vector_store %arg6[%c0_50, %c0_51, %c0_52], %84 {strides = array<i32>} : memref<1x8x1xf32, #tpu.memory_space<vmem>>, vector<1x8x1xf32>,
    %c0_53 = arith.constant 0 : index
    %c0_54 = arith.constant 0 : index
    %c0_55 = arith.constant 0 : index
    %85 = vector.load %arg7[%c0_53, %c0_54, %c0_55] : memref<1x8x1xf32, #tpu.memory_space<vmem>>, vector<1x8x1xf32>
    %86 = vector.shape_cast %85 : vector<1x8x1xf32> to vector<8x1xf32>
    %87 = arith.mulf %73, %73 : vector<8x256xf32>
    %cst_56 = arith.constant dense<0.000000e+00> : vector<8xf32>
    %88 = vector.multi_reduction <add>, %87, %cst_56 [1] : vector<8x256xf32> to vector<8xf32>
    %89 = vector.shape_cast %88 : vector<8xf32> to vector<8x1xf32>
    %90 = arith.addf %86, %89 : vector<8x1xf32>
    %c0_57 = arith.constant 0 : index
    %c0_58 = arith.constant 0 : index
    %c0_59 = arith.constant 0 : index
    %91 = vector.load %arg7[%c0_57, %c0_58, %c0_59] : memref<1x8x1xf32, #tpu.memory_space<vmem>>, vector<1x8x1xf32>
    %92 = vector.shape_cast %91 : vector<1x8x1xf32> to vector<8x1xf32>
    %93 = vector.shape_cast %90 : vector<8x1xf32> to vector<1x8x1xf32>
    tpu.vector_store %arg7[%c0_57, %c0_58, %c0_59], %93 {strides = array<i32>} : memref<1x8x1xf32, #tpu.memory_space<vmem>>, vector<1x8x1xf32>,
    return
  }
  func.func @transform_0(%arg0: i32, %arg1: i32) -> (i32, i32, i32) {
    %c0_i32 = arith.constant 0 : i32
    %c0_i32_0 = arith.constant 0 : i32
    %c0_i32_1 = arith.constant 0 : i32
    return %arg0, %c0_i32, %c0_i32_0 : i32, i32, i32
  }
  func.func @transform_1(%arg0: i32, %arg1: i32) -> (i32, i32) {
    %c0_i32 = arith.constant 0 : i32
    %c0_i32_0 = arith.constant 0 : i32
    %c0_i32_1 = arith.constant 0 : i32
    return %c0_i32, %c0_i32_0 : i32, i32
  }
  func.func @transform_2(%arg0: i32, %arg1: i32) -> (i32, i32) {
    %c0_i32 = arith.constant 0 : i32
    %c0_i32_0 = arith.constant 0 : i32
    %c0_i32_1 = arith.constant 0 : i32
    return %c0_i32, %c0_i32_0 : i32, i32
  }
  func.func @transform_3(%arg0: i32, %arg1: i32) -> (i32, i32, i32) {
    %c0_i32 = arith.constant 0 : i32
    %c0_i32_0 = arith.constant 0 : i32
    return %arg0, %c0_i32, %arg1 : i32, i32, i32
  }
  func.func @transform_4(%arg0: i32, %arg1: i32) -> (i32, i32, i32) {
    %c0_i32 = arith.constant 0 : i32
    %c0_i32_0 = arith.constant 0 : i32
    %c0_i32_1 = arith.constant 0 : i32
    return %arg0, %c0_i32, %c0_i32_0 : i32, i32, i32
  }
  func.func @transform_5(%arg0: i32, %arg1: i32) -> (i32, i32, i32) {
    %c0_i32 = arith.constant 0 : i32
    %c0_i32_0 = arith.constant 0 : i32
    %c0_i32_1 = arith.constant 0 : i32
    return %arg0, %c0_i32, %c0_i32_0 : i32, i32, i32
  }
}

</mosaic_0001>

<llo_original>
// kernel: tpu_custom_call.1
$region0: #{tpu_custom_call.1}
  #allocation0 [shape = 'u32[]', space=smem, size = 0x4, offset = 0x4, fixed_abs, tag = 'smem constant byte address 0x4 - core index']
  #allocation1 [shape = 'u32[144,128]{1,0:T(1,128)}', space=vmem, size = 0x12000, scoped, tag = 'internal scratch']
  #allocation2 [shape = 'f32[12,256]{1,0:T(8,128)}', space=vmem, size = 0x4000, scoped, tag = 'scratch operand']
  %s0 = inlined_call_operand.vmem [shape: bf16[2,4,130], index: 0, kind: input, shape index: {}]
  %s1 = inlined_call_operand.vmem [shape: bf16[8,12], index: 1, kind: input, shape index: {}]
  %s2 = inlined_call_operand.vmem [shape: f32[8,1], index: 2, kind: input, shape index: {}]
  %s3 = inlined_call_operand.hbm [shape: bf16[2,8,128], index: 3, kind: output, shape index: {0}]
  %s4 = inlined_call_operand.vmem [shape: f32[1,8,1], index: 4, kind: output, shape index: {1}]
  %s5 = inlined_call_operand.vmem [shape: f32[1,8,1], index: 5, kind: output, shape index: {2}]
  %6 = xla_tuple %s3, %s4, %s5
  %s7 = sld [smem:[#allocation0]]
  $region42: #{tpu_custom_call.1} parent=0
    _
  %s9 = ssub.s32 1, %s7
  %s10 = scalar_select 0, %s9, %s7
  $region1: #{tpu_custom_call.1} parent=0
    #allocation3 [shape = 'u8[4096]{0}', space=vmem, size = 0x1000, scoped, tag = 'output window, operand 0, single buffered']
    #allocation4 [shape = 's32[1]{0}', space=sflag, size = 0x4, scoped, tag = 'scoped memory for tpu_custom_call.1']
    %11 = vsyncpa [#allocation4], 0
    // Predicated region
    $region2: #{tpu_custom_call.1} parent=1 // pred_check
      _
    $region3: #{tpu_custom_call.1} parent=1 // pred_check_branch
      %13 = sbr.rel (0) target = $region5
    $region4: #{tpu_custom_call.1} parent=1 // pred_region
      _
    $region5: #{tpu_custom_call.1} parent=1 // pred_fallthru
      _
    // Predicated region
    $region6: #{tpu_custom_call.1} parent=1 // pred_check
      _
    $region7: #{tpu_custom_call.1} parent=1 // pred_check_branch
      %15 = sbr.rel (0) target = $region9
    $region8: #{tpu_custom_call.1} parent=1 // pred_region
      _
    $region9: #{tpu_custom_call.1} parent=1 // pred_fallthru
      _
    // Predicated region
    $region10: #{tpu_custom_call.1} parent=1 // pred_check
      _
    $region11: #{tpu_custom_call.1} parent=1 // pred_check_branch
      %17 = sbr.rel (0) target = $region13
    $region12: #{tpu_custom_call.1} parent=1 // pred_region
      _
    $region13: #{tpu_custom_call.1} parent=1 // pred_fallthru
      _
    %v18 = vld [vmem:[%s0] sm:$0x3]
    %v19 = vunpack.c.l.bf16 %v18
    %20 = vst [vmem:[#allocation2] sm:$0xf] %v19
    %v21 = vld [vmem:[%s0] sm:$0xf]
    %v22 = vunpack.c.l.bf16 %v21
    %v24 = vcombine.low %v22, %v22
    %25 = vrot.lane.b32.xlu0 %v24, 127
    %v26 = vpop.permute.xlu0 %25
    %27 = vrot.lane.b32.xlu0 %v22, 127
    %v28 = vpop.permute.xlu0 %27
    %vm29 = vcmask 1039360
    %v30 = vsel %vm29, %v26, %v28
    %32 = vst [vmem:[#allocation2] sm:$0xf0] %v30
    %v33 = vld [vmem:[%s0] sm:$0xf]
    %v34 = vunpack.c.l.bf16 %v33
    %v36 = vcombine.high %v34, %v34
    %37 = vrot.lane.b32.xlu0 %v34, 126
    %v38 = vpop.permute.xlu0 %37
    %39 = vrot.lane.b32.xlu0 %v36, 126
    %v40 = vpop.permute.xlu0 %39
    %vm41 = vcmask 1031168
    %v42 = vsel %vm41, %v38, %v40
    %44 = vst [vmem:[#allocation2 + $0x10] sm:$0xf] %v42
    %s45 = scalar_lea.vmem %s0, 4
    %v46 = vld [vmem:[%s45] sm:$0x3]
    %v47 = vunpack.c.l.bf16 %v46
    %48 = vst [vmem:[#allocation2 + $0x8] sm:$0xf] %v47
    %v49 = vld [vmem:[%s45] sm:$0xf]
    %v50 = vunpack.c.l.bf16 %v49
    %v52 = vcombine.low %v50, %v50
    %53 = vrot.lane.b32.xlu0 %v52, 127
    %v54 = vpop.permute.xlu0 %53
    %55 = vrot.lane.b32.xlu0 %v50, 127
    %v56 = vpop.permute.xlu0 %55
    %v57 = vsel %vm29, %v54, %v56
    %59 = vst [vmem:[#allocation2 + $0x8] sm:$0xf0] %v57
    %v60 = vld [vmem:[%s45] sm:$0xf]
    %v61 = vunpack.c.l.bf16 %v60
    %v63 = vcombine.high %v61, %v61
    %64 = vrot.lane.b32.xlu0 %v61, 126
    %v65 = vpop.permute.xlu0 %64
    %66 = vrot.lane.b32.xlu0 %v63, 126
    %v67 = vpop.permute.xlu0 %66
    %v68 = vsel %vm41, %v65, %v67
    %70 = vst [vmem:[#allocation2 + $0x18] sm:$0xf] %v68
    %v71 = vld [vmem:[%s1] sm:$0xf]
    %v72 = vunpack.c.l.bf16 %v71
    %v73 = vld [vmem:[#allocation2] sm:$0xff]
    %v74 = vld [vmem:[#allocation2 + $0x8] sm:$0xff]
    %v75 = vld [vmem:[#allocation2 + $0x10] sm:$0xf]
    %v76 = vld [vmem:[#allocation2 + $0x18] sm:$0xf]
    %v77 = vld [vmem:[%s2] sm:$0xff]
    %79 = vset.pattern.permute.xlu0 0
    %80 = vperm.xlu0 %79, %v77
    %v81 = vpop.permute.xlu0 %80
    %vm83 = vcmask 97280
    %v85 = vsel %vm83, %v72, 0
    %vm87 = vcmask 1043456
    %v89 = vsel %vm87, %v75, 0
    %v92 = vsel %vm87, %v76, 0
    %94 = vmatprep.subr.mxu0 %v74
    %95 = vmatpush1.msra.mxu0 %v73
    %96 = vmatprep.subr.mxu0 %v92
    %97 = vmatpush1.msra.mxu0 %v89
    %98 = vmatprep.subr.mxu0 0.0
    %99 = vmatpush1.msra.mxu0 0.0
    %100 = vmatprep.subr.mxu0 0.0
    %101 = vmatpush1.msra.mxu0 0.0
    %102 = vmatprep.subr.mxu0 0.0
    %103 = vmatpush1.msra.mxu0 0.0
    %104 = vmatprep.subr.mxu0 0.0
    %105 = vmatpush1.msra.mxu0 0.0
    %106 = vmatprep.subr.mxu0 0.0
    %107 = vmatpush1.msra.mxu0 0.0
    %108 = vmatprep.subr.mxu0 0.0
    %109 = vmatpush1.msra.mxu0 0.0
    %110 = vmatprep.subr.mxu0 0.0
    %111 = vmatpush1.msra.mxu0 0.0
    %112 = vmatprep.subr.mxu0 0.0
    %113 = vmatpush1.msra.mxu0 0.0
    %114 = vmatprep.subr.mxu0 0.0
    %115 = vmatpush1.msra.mxu0 0.0
    %116 = vmatprep.subr.mxu0 0.0
    %117 = vmatpush1.msra.mxu0 0.0
    %118 = vmatprep.subr.mxu0 0.0
    %119 = vmatpush1.msra.mxu0 0.0
    %120 = vmatprep.subr.mxu0 0.0
    %121 = vmatpush1.msra.mxu0 0.0
    %122 = vmatprep.subr.mxu0 0.0
    %123 = vmatpush1.msra.mxu0 0.0
    %124 = vmatprep.subr.mxu0 0.0
    %125 = vmatpush1.msra.mxu0 0.0
    %126 = vmatprep.subr.mxu0 0.0
    %127 = vmatpush1.msra.mxu0 0.0
    %128 = vmatprep.subr.mxu0 0.0
    %129 = vmatpush1.msra.mxu0 0.0
    %130 = vmatprep.subr.mxu0 0.0
    %131 = vmatpush1.msra.mxu0 0.0
    %132 = vmatprep.subr.mxu0 0.0
    %133 = vmatpush1.msra.mxu0 0.0
    %134 = vmatprep.subr.mxu0 0.0
    %135 = vmatpush1.msra.mxu0 0.0
    %136 = vmatprep.subr.mxu0 0.0
    %137 = vmatpush1.msra.mxu0 0.0
    %138 = vmatprep.subr.mxu0 0.0
    %139 = vmatpush1.msra.mxu0 0.0
    %140 = vmatprep.subr.mxu0 0.0
    %141 = vmatpush1.msra.mxu0 0.0
    %142 = vmatprep.subr.mxu0 0.0
    %143 = vmatpush1.msra.mxu0 0.0
    %144 = vmatprep.subr.mxu0 0.0
    %145 = vmatpush1.msra.mxu0 0.0
    %146 = vmatprep.subr.mxu0 0.0
    %147 = vmatpush1.msra.mxu0 0.0
    %148 = vmatprep.subr.mxu0 0.0
    %149 = vmatpush1.msra.mxu0 0.0
    %150 = vmatprep.subr.mxu0 0.0
    %151 = vmatpush1.msra.mxu0 0.0
    %152 = vmatprep.subr.mxu0 0.0
    %153 = vmatpush1.msra.mxu0 0.0
    %154 = vmatprep.subr.mxu0 0.0
    %155 = vmatpush1.msra.mxu0 0.0
    %156 = vmatprep.subr.mxu0 0.0
    %157 = vmatpush1.msra.mxu0 0.0
    %158 = vmatprep.mubr.f32.mxu0 0.0
    %159 = vmatmul.mubr.f32.gmra.mrb[0].mxu0 %v85
    %v160 = vpop.f32.mrb[0].mxu0
    %v161 = vadd.f32 %v81, %v160
    %v162 = vpop.f32.mrb[0].mxu0
    %v163 = vadd.f32 %v81, %v162
    %164 = vdwg.mxu0
    %v165 = vmax.f32 %v161, 0.0
    %v166 = vmax.f32 %v163, 0.0
    %v167 = vpack.c.bf16 %v165, %v165
    %168 = vst [vmem:[#allocation3] sm:$0xf] %v167
    %v169 = vpack.c.bf16 %v166, %v166
    %s170 = scalar_lea.vmem [#allocation3], 4
    %171 = vst [vmem:[%s170] sm:$0xf] %v169
    %v172 = vlaneseq
    %v173 = vand.u32 %v172, 127
    %v174 = vadd.s32 %v173, 128
    %s175 = smul.u32 0, 128
    %vm176 = vcmp.lt.s32.totalorder %v173, 0
    %v177 = vsub.s32 0, %v173
    %v178 = vsel %vm176, %v177, %v173
    %v179 = vshrl.u32 %v178, 7
    %v180 = vand.u32 %v178, 127
    %v181 = vsub.s32 0, %v180
    %v182 = vsel %vm176, %v181, %v180
    %vm183 = vcmp.lt.s32.totalorder %v174, 0
    %v184 = vsub.s32 0, %v174
    %v185 = vsel %vm183, %v184, %v174
    %v186 = vshrl.u32 %v185, 7
    %v187 = vand.u32 %v185, 127
    %v188 = vsub.s32 0, %v187
    %v189 = vsel %vm183, %v188, %v187
    %vm190 = vcmp.ne.s32.totalorder %v182, 0
    %vm191 = vcmp.ne.s32.totalorder %v189, 0
    %vm192 = vcmp.lt.s32.totalorder %v182, 0
    %vm193 = vcmp.lt.s32.totalorder %v189, 0
    %vm194 = vmand %vm192, %vm190
    %vm195 = vmand %vm193, %vm191
    %v196 = vadd.s32 %v182, 128
    %v197 = vadd.s32 %v189, 128
    %v198 = vsel %vm194, %v196, %v182
    %v199 = vsel %vm195, %v197, %v189
    %v200 = vstv %s175
    %v201 = vadd.s32 %v200, %v198
    %v202 = vadd.s32 %v200, %v199
    %vm203 = vcmp.lt.s32.totalorder %v201, 14
    %vm204 = vcmp.lt.s32.totalorder %v202, 14
    %v205 = vsel %vm203, 1, 0
    %v206 = vsel %vm204, 1, 0
    %v207 = vcvt.s32.f32 %v205
    %v208 = vcvt.s32.f32 %v206
    %v209 = vld [vmem:[%s2] sm:$0xff]
    %v210 = vmax.f32 %v209, 0.0
    %212 = vset.pattern.permute.xlu0 0
    %213 = vperm.xlu0 %212, %v210
    %v214 = vpop.permute.xlu0 %213
    %v216 = vsub.f32 %v165, %v214
    %v217 = vsub.f32 %v166, %v214
    %v218 = vmul.f32 %v216, %v207
    %v219 = vmul.f32 %v217, %v208
    %p220 = scmp.eq.s32.totalorder 0, 0
    // Predicated region
    $region14: #{tpu_custom_call.1} parent=1 // pred_check
      %p221 = pneg %p220
    $region15: #{tpu_custom_call.1} parent=1 // pred_check_branch
      %223 = sbr.rel (%p221) target = $region17
    $region16: #{tpu_custom_call.1} parent=1 // pred_region
      %vm224 = vcmask 7168
      %225 = vst.msk [vmem:[%s4] sm:$0xff] %vm224, 0.0
      %226 = vst.msk [vmem:[%s5] sm:$0xff] %vm224, 0.0
    $region17: #{tpu_custom_call.1} parent=1 // pred_fallthru
      _
    %v227 = vld [vmem:[%s4] sm:$0xff]
    %v228 = vadd.f32 %v218, %v219
    %229 = vadd.xlane.f32.xlu0 %v228
    %v230 = vpop.xlane.xlu0 %229
    %v231 = vadd.f32 %v227, %v230
    %vm232 = vcmask 7168
    %233 = vst.msk [vmem:[%s4] sm:$0xff] %vm232, %v231
    %v234 = vld [vmem:[%s5] sm:$0xff]
    %v235 = vmul.f32 %v218, %v218
    %v236 = vmul.f32 %v219, %v219
    %v237 = vadd.f32 %v235, %v236
    %238 = vadd.xlane.f32.xlu0 %v237
    %v239 = vpop.xlane.xlu0 %238
    %v240 = vadd.f32 %v234, %v239
    %241 = vst.msk [vmem:[%s5] sm:$0xff] %vm232, %v240
    // Predicated region
    $region18: #{tpu_custom_call.1} parent=1 // pred_check
      _
    $region19: #{tpu_custom_call.1} parent=1 // pred_check_branch
      %243 = sbr.rel (0) target = $region21
    $region20: #{tpu_custom_call.1} parent=1 // pred_region
      %s245 = ssub.s32 128, 128
      %246 = vsyncadd [#allocation4], %s245
      %s247 = sshll.u32 [#allocation3], 4
      %s248 = int_to_ptr.vmem [resolvable:$true] %s247
      %253 = dma.vmem_to_hbm [thread:$0]  %s248, 128, %s3, [#allocation4], 64, 64, 4
    $region21: #{tpu_custom_call.1} parent=1 // pred_fallthru
      _
    // Predicated region
    $region22: #{tpu_custom_call.1} parent=1 // pred_check
      _
    $region23: #{tpu_custom_call.1} parent=1 // pred_check_branch
      %255 = sbr.rel (0) target = $region25
    $region24: #{tpu_custom_call.1} parent=1 // pred_region
      _
    $region25: #{tpu_custom_call.1} parent=1 // pred_fallthru
      _
    // Predicated region
    $region26: #{tpu_custom_call.1} parent=1 // pred_check
      _
    $region27: #{tpu_custom_call.1} parent=1 // pred_check_branch
      %257 = sbr.rel (0) target = $region29
    $region28: #{tpu_custom_call.1} parent=1 // pred_region
      _
    $region29: #{tpu_custom_call.1} parent=1 // pred_fallthru
      _
    // Predicated region
    $region30: #{tpu_custom_call.1} parent=1 // pred_check
      _
    $region31: #{tpu_custom_call.1} parent=1 // pred_check_branch
      %259 = sbr.rel (0) target = $region33
    $region32: #{tpu_custom_call.1} parent=1 // pred_region
      %260 = dma.done [#allocation4], 128
    $region33: #{tpu_custom_call.1} parent=1 // pred_fallthru
      _
    // Predicated region
    $region34: #{tpu_custom_call.1} parent=1 // pred_check
      _
    $region35: #{tpu_custom_call.1} parent=1 // pred_check_branch
      %262 = sbr.rel (0) target = $region37
    $region36: #{tpu_custom_call.1} parent=1 // pred_region
      _
    $region37: #{tpu_custom_call.1} parent=1 // pred_fallthru
      _
    // Predicated region
    $region38: #{tpu_custom_call.1} parent=1 // pred_check
      _
    $region39: #{tpu_custom_call.1} parent=1 // pred_check_branch
      %264 = sbr.rel (0) target = $region41
    $region40: #{tpu_custom_call.1} parent=1 // pred_region
      _
    $region41: #{tpu_custom_call.1} parent=1 // pred_fallthru
      _
    %265 = vsyncpa [#allocation4], 1

</llo_original>
